<compile_context>
chip_gen: v7x
topology: tpu7x:2x2x1
jax: 0.10.0
libtpu: 0.0.40
codegen_flags: <defaults>
</compile_context>

<pallas_src>
import jax
import jax.numpy as jnp
import numpy as np
from jax import lax
from jax.experimental import pallas as pl
from jax.experimental.pallas import tpu as pltpu


def _skipgram_kernel(tgt_ref, ctx_ref,        # (1, TB) int32 index blocks (VMEM)
                     emb_ref, out_emb_ref,    # (V, D) VMEM-resident tables
                     o_ref):                  # (1, TB) lane-dense output block
    V = emb_ref.shape[0]
    tb = tgt_ref.shape[-1]

    # One-hot masks, (V, TB): onehot[v, j] = (idx[j] == v).  Exact in any dtype.
    iota_v = lax.broadcasted_iota(jnp.int32, (V, tb), 0)
    t_onehot = (iota_v == tgt_ref[...]).astype(emb_ref.dtype)
    c_onehot = (iota_v == ctx_ref[...]).astype(out_emb_ref.dtype)

    # MXU gather straight into (D, TB) layout: (V, D)^T @ (V, TB) -> (D, TB),
    # contracting over V with f32 accumulation.
    dn = (((0,), (0,)), ((), ()))
    t_emb = lax.dot_general(emb_ref[...], t_onehot, dn,
                            preferred_element_type=jnp.float32)   # (D, TB)
    c_emb = lax.dot_general(out_emb_ref[...], c_onehot, dn,
                            preferred_element_type=jnp.float32)   # (D, TB)

    # Row dot products: elementwise multiply then sublane-reduce over D.
    # Result lands lane-major -> unmasked lane-dense (1, TB) store.
    o_ref[...] = jnp.sum(t_emb * c_emb, axis=0, keepdims=True)


def skipgram_forward(target, context, embeddings, output_table, *, block_b=None):
    """target, context: int (B,); embeddings, output_table: (V, D) tables."""
    B = target.shape[0]
    V, D = embeddings.shape
    assert output_table.shape == (V, D)
    assert D % 128 == 0, "embedding_dim must be a multiple of 128 (TPU lanes)"

    if block_b is None:
        block_b = 1 << max(7, max(B - 1, 0).bit_length())   # next pow2, >= 128
        block_b = min(block_b, 512)
        if B >= 256:
            # Keep >= 2 grid steps so the "parallel" batch axis can be sharded
            # across v7x's two TensorCores (neutral on v5e / v6e).
            half = -(-((B + 1) // 2) // 128) * 128
            block_b = min(block_b, max(128, half))
    # Bound the in-kernel (V, block_b) one-hot intermediates (2 of them, f32).
    while block_b > 128 and 2 * V * block_b * 4 > 4 * 2**20:
        block_b = max(128, ((block_b // 2) // 128) * 128)
    assert block_b % 128 == 0

    n_blocks = pl.cdiv(B, block_b)
    b_pad = n_blocks * block_b

    itemsize = jnp.dtype(embeddings.dtype).itemsize
    table_bytes = 2 * V * D * itemsize              # single-buffered resident tables
    onehot_bytes = 2 * V * block_b * 4              # in-kernel intermediates
    gather_bytes = 2 * block_b * D * 4              # (D, TB) gathered tiles
    idx_bytes = 2 * 2 * block_b * 4                 # double-buffered index blocks
    out_bytes = 2 * block_b * 4                     # double-buffered output block
    vmem_est = table_bytes + onehot_bytes + gather_bytes + idx_bytes + out_bytes

    # Resident-table fast path only; stay under scoped-VMEM budgets everywhere.
    assert vmem_est <= 28 * 1024 * 1024, (
        "embedding tables too large for the VMEM-resident fast path "
        f"(~{vmem_est / 2**20:.1f} MiB estimated)")
    # TODO(synk): for vocabularies that do not fit VMEM (esp. on v7x's 64 MiB),
    # add a streamed path: tables at memory_space=pl.ANY plus a double-buffered
    # per-row make_async_copy DMA gather driven by scalar-prefetched indices.

    # Explicit scoped-VMEM limit: estimate + headroom (v5e default is ~16 MiB).
    vmem_limit = int(min(48 * 2**20, max(16 * 2**20, vmem_est + vmem_est // 4)))

    # Pad (with index 0) and present the indices as lane-dense (1, b_pad) rows;
    # padded lanes compute throwaway values that are sliced off at the end.
    tgt = jnp.pad(target.astype(jnp.int32), (0, b_pad - B)).reshape(1, b_pad)
    ctx = jnp.pad(context.astype(jnp.int32), (0, b_pad - B)).reshape(1, b_pad)

    cost = pl.CostEstimate(
        flops=4 * V * D * b_pad + 2 * b_pad * D,
        transcendentals=0,
        bytes_accessed=2 * V * D * itemsize + 2 * b_pad * 4 + b_pad * 4,
    )

    out = pl.pallas_call(
        _skipgram_kernel,
        out_shape=jax.ShapeDtypeStruct((1, b_pad), jnp.float32),
        grid_spec=pltpu.PrefetchScalarGridSpec(
            num_scalar_prefetch=0,
            grid=(n_blocks,),                 # one batch block per grid step
            in_specs=[
                pl.BlockSpec((1, block_b), lambda i: (0, i)),
                pl.BlockSpec((1, block_b), lambda i: (0, i)),
                # Whole tables resident in VMEM for the entire grid, single
                # buffer (no per-step DMA, no double-buffering).
                pl.BlockSpec(memory_space=pltpu.MemorySpace.VMEM),
                pl.BlockSpec(memory_space=pltpu.MemorySpace.VMEM),
            ],
            out_specs=pl.BlockSpec((1, block_b), lambda i: (0, i)),
        ),
        compiler_params=pltpu.CompilerParams(
            dimension_semantics=("parallel",),
            vmem_limit_bytes=vmem_limit),
        cost_estimate=cost,
    )(tgt, ctx, embeddings, output_table)

    return out[0, :B]   # (B,)


if __name__ == "__main__":
    vocab_size = 32
    embedding_dim = 128
    batch = 8

    key = jax.random.PRNGKey(0)
    k_emb, k_out, k_tgt, k_ctx = jax.random.split(key, 4)

    # Deterministic "nn.Embedding" weights (synthetic, N(0,1) like torch).
    embeddings = jax.random.normal(k_emb, (vocab_size, embedding_dim), jnp.float32)
    output_table = jax.random.normal(k_out, (vocab_size, embedding_dim), jnp.float32)

    target = jax.random.randint(k_tgt, (batch,), 0, vocab_size, dtype=jnp.int32)
    context = jax.random.randint(k_ctx, (batch,), 0, vocab_size, dtype=jnp.int32)

    result = skipgram_forward(target, context, embeddings, output_table)
    result = jax.block_until_ready(result)

    # Pure-JAX reference for correctness.
    ref = jnp.sum(embeddings[target] * output_table[context], axis=1)
    np.testing.assert_allclose(np.asarray(result), np.asarray(ref),
                               rtol=1e-5, atol=1e-5)

    print("KERNEL_OK")
</pallas_src>

<mosaic_0001>
module attributes {stable_mosaic.version = 11 : i64} {
  func.func @_skipgram_kernel(%arg0: i32, %arg1: memref<1x128xi32, #tpu.memory_space<vmem>>, %arg2: memref<1x128xi32, #tpu.memory_space<vmem>>, %arg3: memref<32x128xf32, #tpu.memory_space<vmem>>, %arg4: memref<32x128xf32, #tpu.memory_space<vmem>>, %arg5: memref<1x128xf32, #tpu.memory_space<vmem>>) attributes {dimension_semantics = [#tpu.dimension_semantics<parallel>], iteration_bounds = array<i64: 1>, scalar_prefetch = 0 : i64, scratch_operands = 0 : i64, tpu.core_type = #tpu.core_type<tc>, window_params = [{transform_indices = @transform_0, window_bounds = array<i64: 1, 128>}, {transform_indices = @transform_1, window_bounds = array<i64: 1, 128>}, {pipeline_mode = #tpu.pipeline_mode<synchronous>, transform_indices = @transform_2, window_bounds = array<i64: 32, 128>}, {pipeline_mode = #tpu.pipeline_mode<synchronous>, transform_indices = @transform_3, window_bounds = array<i64: 32, 128>}, {transform_indices = @transform_4, window_bounds = array<i64: 1, 128>}]} {
    %0 = tpu.iota {dimensions = array<i32: 0>} : vector<32x128xi32>
    %c0 = arith.constant 0 : index
    %c0_0 = arith.constant 0 : index
    %1 = vector.load %arg1[%c0, %c0_0] : memref<1x128xi32, #tpu.memory_space<vmem>>, vector<1x128xi32>
    %2 = vector.broadcast %1 : vector<1x128xi32> to vector<32x128xi32>
    %3 = arith.cmpi eq, %0, %2 : vector<32x128xi32>
    %4 = arith.extui %3 : vector<32x128xi1> to vector<32x128xi32>
    %5 = arith.sitofp %4 : vector<32x128xi32> to vector<32x128xf32>
    %c0_1 = arith.constant 0 : index
    %c0_2 = arith.constant 0 : index
    %6 = vector.load %arg2[%c0_1, %c0_2] : memref<1x128xi32, #tpu.memory_space<vmem>>, vector<1x128xi32>
    %7 = vector.broadcast %6 : vector<1x128xi32> to vector<32x128xi32>
    %8 = arith.cmpi eq, %0, %7 : vector<32x128xi32>
    %9 = arith.extui %8 : vector<32x128xi1> to vector<32x128xi32>
    %10 = arith.sitofp %9 : vector<32x128xi32> to vector<32x128xf32>
    %c0_3 = arith.constant 0 : index
    %c0_4 = arith.constant 0 : index
    %11 = vector.load %arg3[%c0_3, %c0_4] : memref<32x128xf32, #tpu.memory_space<vmem>>, vector<32x128xf32>
    %cst = arith.constant dense<0.000000e+00> : vector<128x128xf32>
    %12 = tpu.matmul %11, %5, %cst {dimension_numbers = #tpu.dot_dimension_numbers<[0], [0], [1], [1], [0, 1, 1, 1], [], []>} : vector<32x128xf32>, vector<32x128xf32>, vector<128x128xf32> -> vector<128x128xf32>
    %c0_5 = arith.constant 0 : index
    %c0_6 = arith.constant 0 : index
    %13 = vector.load %arg4[%c0_5, %c0_6] : memref<32x128xf32, #tpu.memory_space<vmem>>, vector<32x128xf32>
    %cst_7 = arith.constant dense<0.000000e+00> : vector<128x128xf32>
    %14 = tpu.matmul %13, %10, %cst_7 {dimension_numbers = #tpu.dot_dimension_numbers<[0], [0], [1], [1], [0, 1, 1, 1], [], []>} : vector<32x128xf32>, vector<32x128xf32>, vector<128x128xf32> -> vector<128x128xf32>
    %15 = arith.mulf %12, %14 : vector<128x128xf32>
    %cst_8 = arith.constant dense<0.000000e+00> : vector<128xf32>
    %16 = vector.multi_reduction <add>, %15, %cst_8 [0] : vector<128x128xf32> to vector<128xf32>
    %17 = vector.shape_cast %16 : vector<128xf32> to vector<1x128xf32>
    %c0_9 = arith.constant 0 : index
    %c0_10 = arith.constant 0 : index
    %18 = vector.load %arg5[%c0_9, %c0_10] : memref<1x128xf32, #tpu.memory_space<vmem>>, vector<1x128xf32>
    tpu.vector_store %arg5[%c0_9, %c0_10], %17 {strides = array<i32>} : memref<1x128xf32, #tpu.memory_space<vmem>>, vector<1x128xf32>,
    return
  }
  func.func @transform_0(%arg0: i32) -> (i32, i32) {
    %c0_i32 = arith.constant 0 : i32
    %c0_i32_0 = arith.constant 0 : i32
    return %c0_i32, %arg0 : i32, i32
  }
  func.func @transform_1(%arg0: i32) -> (i32, i32) {
    %c0_i32 = arith.constant 0 : i32
    %c0_i32_0 = arith.constant 0 : i32
    return %c0_i32, %arg0 : i32, i32
  }
  func.func @transform_2(%arg0: i32) -> (i32, i32) {
    %c0_i32 = arith.constant 0 : i32
    %c0_i32_0 = arith.constant 0 : i32
    %c0_i32_1 = arith.constant 0 : i32
    return %c0_i32, %c0_i32_0 : i32, i32
  }
  func.func @transform_3(%arg0: i32) -> (i32, i32) {
    %c0_i32 = arith.constant 0 : i32
    %c0_i32_0 = arith.constant 0 : i32
    %c0_i32_1 = arith.constant 0 : i32
    return %c0_i32, %c0_i32_0 : i32, i32
  }
  func.func @transform_4(%arg0: i32) -> (i32, i32) {
    %c0_i32 = arith.constant 0 : i32
    %c0_i32_0 = arith.constant 0 : i32
    return %c0_i32, %arg0 : i32, i32
  }
}

</mosaic_0001>

<llo_original>
// kernel: tpu_custom_call.1
$region0: #{tpu_custom_call.1}
  #allocation0 [shape = 'u32[]', space=smem, size = 0x4, offset = 0x4, fixed_abs, tag = 'smem constant byte address 0x4 - core index']
  #allocation1 [shape = 'u32[144,128]{1,0:T(1,128)}', space=vmem, size = 0x12000, scoped, tag = 'internal scratch']
  %s0 = inlined_call_operand.hbm [shape: s32[1,128], index: 0, kind: input, shape index: {}]
  %s1 = inlined_call_operand.vmem [shape: s32[1,128], index: 1, kind: input, shape index: {}]
  %s2 = inlined_call_operand.hbm [shape: f32[32,128], index: 2, kind: input, shape index: {}]
  %s3 = inlined_call_operand.hbm [shape: f32[32,128], index: 3, kind: input, shape index: {}]
  %s4 = inlined_call_operand.hbm [shape: f32[1,128], index: 4, kind: output, shape index: {}]
  %s5 = sld [smem:[#allocation0]]
  $region38: #{tpu_custom_call.1} parent=0
    _
  %s7 = ssub.s32 1, %s5
  %s8 = scalar_select 0, %s7, %s5
  $region1: #{tpu_custom_call.1} parent=0
    #allocation2 [shape = 'u8[512]{0}', space=vmem, size = 0x400, scoped, tag = 'input window, operand 0, single buffered']
    #allocation3 [shape = 's32[1]{0}', space=sflag, size = 0x4, scoped, tag = 'scoped memory for tpu_custom_call.1']
    #allocation4 [shape = 's32[1]{0}', space=sflag, size = 0x4, scoped, tag = 'scoped memory for tpu_custom_call.1']
    #allocation5 [shape = 'u8[16384]{0}', space=vmem, size = 0x4000, scoped, tag = 'input window, operand 2, single buffered']
    #allocation6 [shape = 's32[1]{0}', space=sflag, size = 0x4, scoped, tag = 'scoped memory for tpu_custom_call.1']
    #allocation7 [shape = 'u8[16384]{0}', space=vmem, size = 0x4000, scoped, tag = 'input window, operand 3, single buffered']
    #allocation8 [shape = 'u8[512]{0}', space=vmem, size = 0x400, scoped, tag = 'output window, operand 0, single buffered']
    %9 = vsyncpa [#allocation3], 0
    %10 = vsyncpa [#allocation6], 0
    %11 = vsyncpa [#allocation4], 0
    // Predicated region
    $region2: #{tpu_custom_call.1} parent=1 // pred_check
      _
    $region3: #{tpu_custom_call.1} parent=1 // pred_check_branch
      %13 = sbr.rel (0) target = $region5
    $region4: #{tpu_custom_call.1} parent=1 // pred_region
      %s15 = ssub.s32 16, 16
      %16 = vsyncadd [#allocation3], %s15
      %s18 = sshll.u32 [#allocation2], 4
      %s19 = int_to_ptr.vmem [resolvable:$true] %s18
      %21 = dma.hbm_to_vmem [thread:$0]  %s0, 16, %s19, [#allocation3]
    $region5: #{tpu_custom_call.1} parent=1 // pred_fallthru
      _
    // Predicated region
    $region6: #{tpu_custom_call.1} parent=1 // pred_check
      _
    $region7: #{tpu_custom_call.1} parent=1 // pred_check_branch
      %23 = sbr.rel (0) target = $region9
    $region8: #{tpu_custom_call.1} parent=1 // pred_region
      _
    $region9: #{tpu_custom_call.1} parent=1 // pred_fallthru
      _
    // Predicated region
    $region10: #{tpu_custom_call.1} parent=1 // pred_check
      _
    $region11: #{tpu_custom_call.1} parent=1 // pred_check_branch
      %25 = sbr.rel (0) target = $region13
    $region12: #{tpu_custom_call.1} parent=1 // pred_region
      %s27 = ssub.s32 512, 512
      %28 = vsyncadd [#allocation6], %s27
      %s29 = sshll.u32 [#allocation5], 4
      %s30 = int_to_ptr.vmem [resolvable:$true] %s29
      %35 = dma.hbm_to_vmem [thread:$0]  %s2, 512, %s30, [#allocation6], 128, 128, 8
    $region13: #{tpu_custom_call.1} parent=1 // pred_fallthru
      _
    // Predicated region
    $region14: #{tpu_custom_call.1} parent=1 // pred_check
      _
    $region15: #{tpu_custom_call.1} parent=1 // pred_check_branch
      %37 = sbr.rel (0) target = $region17
    $region16: #{tpu_custom_call.1} parent=1 // pred_region
      %s39 = ssub.s32 512, 512
      %40 = vsyncadd [#allocation6], %s39
      %s41 = sshll.u32 [#allocation7], 4
      %s42 = int_to_ptr.vmem [resolvable:$true] %s41
      %47 = dma.hbm_to_vmem [thread:$0]  %s3, 512, %s42, [#allocation6], 128, 128, 8
    $region17: #{tpu_custom_call.1} parent=1 // pred_fallthru
      _
    // Predicated region
    $region18: #{tpu_custom_call.1} parent=1 // pred_check
      _
    $region19: #{tpu_custom_call.1} parent=1 // pred_check_branch
      %49 = sbr.rel (0) target = $region21
    $region20: #{tpu_custom_call.1} parent=1 // pred_region
      %50 = dma.done [#allocation3], 16
    $region21: #{tpu_custom_call.1} parent=1 // pred_fallthru
      _
    // Predicated region
    $region22: #{tpu_custom_call.1} parent=1 // pred_check
      _
    $region23: #{tpu_custom_call.1} parent=1 // pred_check_branch
      %52 = sbr.rel (0) target = $region25
    $region24: #{tpu_custom_call.1} parent=1 // pred_region
      %53 = dma.done [#allocation6], 512
    $region25: #{tpu_custom_call.1} parent=1 // pred_fallthru
      _
    // Predicated region
    $region26: #{tpu_custom_call.1} parent=1 // pred_check
      _
    $region27: #{tpu_custom_call.1} parent=1 // pred_check_branch
      %55 = sbr.rel (0) target = $region29
    $region28: #{tpu_custom_call.1} parent=1 // pred_region
      %56 = dma.done [#allocation6], 512
    $region29: #{tpu_custom_call.1} parent=1 // pred_fallthru
      _
    %v57 = vlaneseq
    %v58 = vshrl.u32 %v57, 7
    %v59 = vadd.s32 %v58, 8
    %v60 = vadd.s32 %v58, 16
    %v61 = vadd.s32 %v58, 24
    %v62 = vld [vmem:[#allocation2] sm:$0x1]
    %v63 = vlaneseq
    %v64 = vshrl.u32 %v63, 7
    %v65 = vsub.s32 0, %v64
    %v66 = vrot.slane %v62, %v65
    %vm67 = vcmp.eq.s32.totalorder %v58, %v66
    %vm68 = vcmp.eq.s32.totalorder %v59, %v66
    %vm69 = vcmp.eq.s32.totalorder %v60, %v66
    %vm70 = vcmp.eq.s32.totalorder %v61, %v66
    %v71 = vsel %vm67, 1, 0
    %v72 = vsel %vm68, 1, 0
    %v73 = vsel %vm69, 1, 0
    %v74 = vsel %vm70, 1, 0
    %v75 = vcvt.s32.f32 %v71
    %v76 = vcvt.s32.f32 %v72
    %v77 = vcvt.s32.f32 %v73
    %v78 = vcvt.s32.f32 %v74
    %v79 = vld [vmem:[%s1] sm:$0x1]
    %v80 = vlaneseq
    %v81 = vshrl.u32 %v80, 7
    %v82 = vsub.s32 0, %v81
    %v83 = vrot.slane %v79, %v82
    %vm84 = vcmp.eq.s32.totalorder %v58, %v83
    %vm85 = vcmp.eq.s32.totalorder %v59, %v83
    %vm86 = vcmp.eq.s32.totalorder %v60, %v83
    %vm87 = vcmp.eq.s32.totalorder %v61, %v83
    %v88 = vsel %vm84, 1, 0
    %v89 = vsel %vm85, 1, 0
    %v90 = vsel %vm86, 1, 0
    %v91 = vsel %vm87, 1, 0
    %v92 = vcvt.s32.f32 %v88
    %v93 = vcvt.s32.f32 %v89
    %v94 = vcvt.s32.f32 %v90
    %v95 = vcvt.s32.f32 %v91
    %v96 = vld [vmem:[#allocation5] sm:$0xff]
    %v97 = vld [vmem:[#allocation5 + $0x8] sm:$0xff]
    %v98 = vld [vmem:[#allocation5 + $0x10] sm:$0xff]
    %v99 = vld [vmem:[#allocation5 + $0x18] sm:$0xff]
    %100 = vxpose.xlu0.b32.start [1/16] %v96, 128
    %101 = vxpose.xlu0.b32.cont [2/16] %v97, 128
    %102 = vxpose.xlu0.b32.cont [3/16] %v98, 128
    %103 = vxpose.xlu0.b32.cont [4/16] %v99, 128
    %104 = vxpose.xlu0.b32.cont [5/16] 0.0, 128
    %105 = vxpose.xlu0.b32.cont [6/16] 0.0, 128
    %106 = vxpose.xlu0.b32.cont [7/16] 0.0, 128
    %107 = vxpose.xlu0.b32.cont [8/16] 0.0, 128
    %108 = vxpose.xlu0.b32.cont [9/16] 0.0, 128
    %109 = vxpose.xlu0.b32.cont [10/16] 0.0, 128
    %110 = vxpose.xlu0.b32.cont [11/16] 0.0, 128
    %111 = vxpose.xlu0.b32.cont [12/16] 0.0, 128
    %112 = vxpose.xlu0.b32.cont [13/16] 0.0, 128
    %113 = vxpose.xlu0.b32.cont [14/16] 0.0, 128
    %114 = vxpose.xlu0.b32.cont [15/16] 0.0, 128
    %115 = vxpose.xlu0.b32.end [16/16] 0.0, 128
    %v116 = vpop.trf.xlu0
    %v117 = vpop.trf.xlu0
    %v118 = vpop.trf.xlu0
    %v119 = vpop.trf.xlu0
    %v120 = vpop.trf.xlu0
    %v121 = vpop.trf.xlu0
    %v122 = vpop.trf.xlu0
    %v123 = vpop.trf.xlu0
    %v124 = vpop.trf.xlu0
    %v125 = vpop.trf.xlu0
    %v126 = vpop.trf.xlu0
    %v127 = vpop.trf.xlu0
    %v128 = vpop.trf.xlu0
    %v129 = vpop.trf.xlu0
    %v130 = vpop.trf.xlu0
    %v131 = vpop.trf.xlu0
    %vm132 = vcmask 261120
    %v134 = vsel %vm132, %v116, 0
    %v137 = vsel %vm132, %v117, 0
    %v140 = vsel %vm132, %v118, 0
    %v143 = vsel %vm132, %v119, 0
    %v146 = vsel %vm132, %v120, 0
    %v149 = vsel %vm132, %v121, 0
    %v152 = vsel %vm132, %v122, 0
    %v155 = vsel %vm132, %v123, 0
    %v158 = vsel %vm132, %v124, 0
    %v161 = vsel %vm132, %v125, 0
    %v164 = vsel %vm132, %v126, 0
    %v167 = vsel %vm132, %v127, 0
    %v170 = vsel %vm132, %v128, 0
    %v173 = vsel %vm132, %v129, 0
    %v176 = vsel %vm132, %v130, 0
    %v179 = vsel %vm132, %v131, 0
    %181 = vmatprep.subr.mxu0 0.0
    %182 = vmatpush1.msra.mxu0 %v75
    %183 = vmatprep.subr.mxu0 0.0
    %184 = vmatpush1.msra.mxu0 %v76
    %185 = vmatprep.subr.mxu0 0.0
    %186 = vmatpush1.msra.mxu0 %v77
    %187 = vmatprep.subr.mxu0 0.0
    %188 = vmatpush1.msra.mxu0 %v78
    %189 = vmatprep.subr.mxu0 0.0
    %190 = vmatpush1.msra.mxu0 0.0
    %191 = vmatprep.subr.mxu0 0.0
    %192 = vmatpush1.msra.mxu0 0.0
    %193 = vmatprep.subr.mxu0 0.0
    %194 = vmatpush1.msra.mxu0 0.0
    %195 = vmatprep.subr.mxu0 0.0
    %196 = vmatpush1.msra.mxu0 0.0
    %197 = vmatprep.subr.mxu0 0.0
    %198 = vmatpush1.msra.mxu0 0.0
    %199 = vmatprep.subr.mxu0 0.0
    %200 = vmatpush1.msra.mxu0 0.0
    %201 = vmatprep.subr.mxu0 0.0
    %202 = vmatpush1.msra.mxu0 0.0
    %203 = vmatprep.subr.mxu0 0.0
    %204 = vmatpush1.msra.mxu0 0.0
    %205 = vmatprep.subr.mxu0 0.0
    %206 = vmatpush1.msra.mxu0 0.0
    %207 = vmatprep.subr.mxu0 0.0
    %208 = vmatpush1.msra.mxu0 0.0
    %209 = vmatprep.subr.mxu0 0.0
    %210 = vmatpush1.msra.mxu0 0.0
    %211 = vmatprep.subr.mxu0 0.0
    %212 = vmatpush1.msra.mxu0 0.0
    %213 = vmatprep.subr.mxu0 0.0
    %214 = vmatpush1.msra.mxu0 0.0
    %215 = vmatprep.subr.mxu0 0.0
    %216 = vmatpush1.msra.mxu0 0.0
    %217 = vmatprep.subr.mxu0 0.0
    %218 = vmatpush1.msra.mxu0 0.0
    %219 = vmatprep.subr.mxu0 0.0
    %220 = vmatpush1.msra.mxu0 0.0
    %221 = vmatprep.subr.mxu0 0.0
    %222 = vmatpush1.msra.mxu0 0.0
    %223 = vmatprep.subr.mxu0 0.0
    %224 = vmatpush1.msra.mxu0 0.0
    %225 = vmatprep.subr.mxu0 0.0
    %226 = vmatpush1.msra.mxu0 0.0
    %227 = vmatprep.subr.mxu0 0.0
    %228 = vmatpush1.msra.mxu0 0.0
    %229 = vmatprep.subr.mxu0 0.0
    %230 = vmatpush1.msra.mxu0 0.0
    %231 = vmatprep.subr.mxu0 0.0
    %232 = vmatpush1.msra.mxu0 0.0
    %233 = vmatprep.subr.mxu0 0.0
    %234 = vmatpush1.msra.mxu0 0.0
    %235 = vmatprep.subr.mxu0 0.0
    %236 = vmatpush1.msra.mxu0 0.0
    %237 = vmatprep.subr.mxu0 0.0
    %238 = vmatpush1.msra.mxu0 0.0
    %239 = vmatprep.subr.mxu0 0.0
    %240 = vmatpush1.msra.mxu0 0.0
    %241 = vmatprep.subr.mxu0 0.0
    %242 = vmatpush1.msra.mxu0 0.0
    %243 = vmatprep.subr.mxu0 0.0
    %244 = vmatpush1.msra.mxu0 0.0
    %245 = vmatprep.mubr.f32.mxu0 0.0
    %246 = vmatmul.mubr.f32.gmra.mrb[0].mxu0 %v134
    %v247 = vpop.f32.mrb[0].mxu0
    %v248 = vadd.f32 0.0, %v247
    %v249 = vpop.f32.mrb[0].mxu0
    %250 = vmatprep.mubr.f32.mxu0 0.0
    %251 = vmatmul.mubr.f32.gmra.mrb[0].mxu0 %v137
    %v252 = vpop.f32.mrb[0].mxu0
    %v253 = vadd.f32 0.0, %v252
    %v254 = vpop.f32.mrb[0].mxu0
    %255 = vmatprep.mubr.f32.mxu0 0.0
    %256 = vmatmul.mubr.f32.gmra.mrb[0].mxu0 %v140
    %v257 = vpop.f32.mrb[0].mxu0
    %v258 = vadd.f32 0.0, %v257
    %v259 = vpop.f32.mrb[0].mxu0
    %260 = vmatprep.mubr.f32.mxu0 0.0
    %261 = vmatmul.mubr.f32.gmra.mrb[0].mxu0 %v143
    %v262 = vpop.f32.mrb[0].mxu0
    %v263 = vadd.f32 0.0, %v262
    %v264 = vpop.f32.mrb[0].mxu0
    %265 = vmatprep.mubr.f32.mxu0 0.0
    %266 = vmatmul.mubr.f32.gmra.mrb[0].mxu0 %v146
    %v267 = vpop.f32.mrb[0].mxu0
    %v268 = vadd.f32 0.0, %v267
    %v269 = vpop.f32.mrb[0].mxu0
    %270 = vmatprep.mubr.f32.mxu0 0.0
    %271 = vmatmul.mubr.f32.gmra.mrb[0].mxu0 %v149
    %v272 = vpop.f32.mrb[0].mxu0
    %v273 = vadd.f32 0.0, %v272
    %v274 = vpop.f32.mrb[0].mxu0
    %275 = vmatprep.mubr.f32.mxu0 0.0
    %276 = vmatmul.mubr.f32.gmra.mrb[0].mxu0 %v152
    %v277 = vpop.f32.mrb[0].mxu0
    %v278 = vadd.f32 0.0, %v277
    %v279 = vpop.f32.mrb[0].mxu0
    %280 = vmatprep.mubr.f32.mxu0 0.0
    %281 = vmatmul.mubr.f32.gmra.mrb[0].mxu0 %v155
    %v282 = vpop.f32.mrb[0].mxu0
    %v283 = vadd.f32 0.0, %v282
    %v284 = vpop.f32.mrb[0].mxu0
    %285 = vmatprep.mubr.f32.mxu0 0.0
    %286 = vmatmul.mubr.f32.gmra.mrb[0].mxu0 %v158
    %v287 = vpop.f32.mrb[0].mxu0
    %v288 = vadd.f32 0.0, %v287
    %v289 = vpop.f32.mrb[0].mxu0
    %290 = vmatprep.mubr.f32.mxu0 0.0
    %291 = vmatmul.mubr.f32.gmra.mrb[0].mxu0 %v161
    %v292 = vpop.f32.mrb[0].mxu0
    %v293 = vadd.f32 0.0, %v292
    %v294 = vpop.f32.mrb[0].mxu0
    %295 = vmatprep.mubr.f32.mxu0 0.0
    %296 = vmatmul.mubr.f32.gmra.mrb[0].mxu0 %v164
    %v297 = vpop.f32.mrb[0].mxu0
    %v298 = vadd.f32 0.0, %v297
    %v299 = vpop.f32.mrb[0].mxu0
    %300 = vmatprep.mubr.f32.mxu0 0.0
    %301 = vmatmul.mubr.f32.gmra.mrb[0].mxu0 %v167
    %v302 = vpop.f32.mrb[0].mxu0
    %v303 = vadd.f32 0.0, %v302
    %v304 = vpop.f32.mrb[0].mxu0
    %305 = vmatprep.mubr.f32.mxu0 0.0
    %306 = vmatmul.mubr.f32.gmra.mrb[0].mxu0 %v170
    %v307 = vpop.f32.mrb[0].mxu0
    %v308 = vadd.f32 0.0, %v307
    %v309 = vpop.f32.mrb[0].mxu0
    %310 = vmatprep.mubr.f32.mxu0 0.0
    %311 = vmatmul.mubr.f32.gmra.mrb[0].mxu0 %v173
    %v312 = vpop.f32.mrb[0].mxu0
    %v313 = vadd.f32 0.0, %v312
    %v314 = vpop.f32.mrb[0].mxu0
    %315 = vmatprep.mubr.f32.mxu0 0.0
    %316 = vmatmul.mubr.f32.gmra.mrb[0].mxu0 %v176
    %v317 = vpop.f32.mrb[0].mxu0
    %v318 = vadd.f32 0.0, %v317
    %v319 = vpop.f32.mrb[0].mxu0
    %320 = vmatprep.mubr.f32.mxu0 0.0
    %321 = vmatmul.mubr.f32.gmra.mrb[0].mxu0 %v179
    %v322 = vpop.f32.mrb[0].mxu0
    %v323 = vadd.f32 0.0, %v322
    %v324 = vpop.f32.mrb[0].mxu0
    %325 = vdwg.mxu0
    %v326 = vld [vmem:[#allocation7] sm:$0xff]
    %v327 = vld [vmem:[#allocation7 + $0x8] sm:$0xff]
    %v328 = vld [vmem:[#allocation7 + $0x10] sm:$0xff]
    %v329 = vld [vmem:[#allocation7 + $0x18] sm:$0xff]
    %330 = vxpose.xlu0.b32.start [1/16] %v326, 128
    %331 = vxpose.xlu0.b32.cont [2/16] %v327, 128
    %332 = vxpose.xlu0.b32.cont [3/16] %v328, 128
    %333 = vxpose.xlu0.b32.cont [4/16] %v329, 128
    %334 = vxpose.xlu0.b32.cont [5/16] 0.0, 128
    %335 = vxpose.xlu0.b32.cont [6/16] 0.0, 128
    %336 = vxpose.xlu0.b32.cont [7/16] 0.0, 128
    %337 = vxpose.xlu0.b32.cont [8/16] 0.0, 128
    %338 = vxpose.xlu0.b32.cont [9/16] 0.0, 128
    %339 = vxpose.xlu0.b32.cont [10/16] 0.0, 128
    %340 = vxpose.xlu0.b32.cont [11/16] 0.0, 128
    %341 = vxpose.xlu0.b32.cont [12/16] 0.0, 128
    %342 = vxpose.xlu0.b32.cont [13/16] 0.0, 128
    %343 = vxpose.xlu0.b32.cont [14/16] 0.0, 128
    %344 = vxpose.xlu0.b32.cont [15/16] 0.0, 128
    %345 = vxpose.xlu0.b32.end [16/16] 0.0, 128
    %v346 = vpop.trf.xlu0
    %v347 = vpop.trf.xlu0
    %v348 = vpop.trf.xlu0
    %v349 = vpop.trf.xlu0
    %v350 = vpop.trf.xlu0
    %v351 = vpop.trf.xlu0
    %v352 = vpop.trf.xlu0
    %v353 = vpop.trf.xlu0
    %v354 = vpop.trf.xlu0
    %v355 = vpop.trf.xlu0
    %v356 = vpop.trf.xlu0
    %v357 = vpop.trf.xlu0
    %v358 = vpop.trf.xlu0
    %v359 = vpop.trf.xlu0
    %v360 = vpop.trf.xlu0
    %v361 = vpop.trf.xlu0
    %v363 = vsel %vm132, %v346, 0
    %v366 = vsel %vm132, %v347, 0
    %v369 = vsel %vm132, %v348, 0
    %v372 = vsel %vm132, %v349, 0
    %v375 = vsel %vm132, %v350, 0
    %v378 = vsel %vm132, %v351, 0
    %v381 = vsel %vm132, %v352, 0
    %v384 = vsel %vm132, %v353, 0
    %v387 = vsel %vm132, %v354, 0
    %v390 = vsel %vm132, %v355, 0
    %v393 = vsel %vm132, %v356, 0
    %v396 = vsel %vm132, %v357, 0
    %v399 = vsel %vm132, %v358, 0
    %v402 = vsel %vm132, %v359, 0
    %v405 = vsel %vm132, %v360, 0
    %v408 = vsel %vm132, %v361, 0
    %410 = vmatprep.subr.mxu0 0.0
    %411 = vmatpush1.msra.mxu0 %v92
    %412 = vmatprep.subr.mxu0 0.0
    %413 = vmatpush1.msra.mxu0 %v93
    %414 = vmatprep.subr.mxu0 0.0
    %415 = vmatpush1.msra.mxu0 %v94
    %416 = vmatprep.subr.mxu0 0.0
    %417 = vmatpush1.msra.mxu0 %v95
    %418 = vmatprep.subr.mxu0 0.0
    %419 = vmatpush1.msra.mxu0 0.0
    %420 = vmatprep.subr.mxu0 0.0
    %421 = vmatpush1.msra.mxu0 0.0
    %422 = vmatprep.subr.mxu0 0.0
    %423 = vmatpush1.msra.mxu0 0.0
    %424 = vmatprep.subr.mxu0 0.0
    %425 = vmatpush1.msra.mxu0 0.0
    %426 = vmatprep.subr.mxu0 0.0
    %427 = vmatpush1.msra.mxu0 0.0
    %428 = vmatprep.subr.mxu0 0.0
    %429 = vmatpush1.msra.mxu0 0.0
    %430 = vmatprep.subr.mxu0 0.0
    %431 = vmatpush1.msra.mxu0 0.0
    %432 = vmatprep.subr.mxu0 0.0
    %433 = vmatpush1.msra.mxu0 0.0
    %434 = vmatprep.subr.mxu0 0.0
    %435 = vmatpush1.msra.mxu0 0.0
    %436 = vmatprep.subr.mxu0 0.0
    %437 = vmatpush1.msra.mxu0 0.0
    %438 = vmatprep.subr.mxu0 0.0
    %439 = vmatpush1.msra.mxu0 0.0
    %440 = vmatprep.subr.mxu0 0.0
    %441 = vmatpush1.msra.mxu0 0.0
    %442 = vmatprep.subr.mxu0 0.0
    %443 = vmatpush1.msra.mxu0 0.0
    %444 = vmatprep.subr.mxu0 0.0
    %445 = vmatpush1.msra.mxu0 0.0
    %446 = vmatprep.subr.mxu0 0.0
    %447 = vmatpush1.msra.mxu0 0.0
    %448 = vmatprep.subr.mxu0 0.0
    %449 = vmatpush1.msra.mxu0 0.0
    %450 = vmatprep.subr.mxu0 0.0
    %451 = vmatpush1.msra.mxu0 0.0
    %452 = vmatprep.subr.mxu0 0.0
    %453 = vmatpush1.msra.mxu0 0.0
    %454 = vmatprep.subr.mxu0 0.0
    %455 = vmatpush1.msra.mxu0 0.0
    %456 = vmatprep.subr.mxu0 0.0
    %457 = vmatpush1.msra.mxu0 0.0
    %458 = vmatprep.subr.mxu0 0.0
    %459 = vmatpush1.msra.mxu0 0.0
    %460 = vmatprep.subr.mxu0 0.0
    %461 = vmatpush1.msra.mxu0 0.0
    %462 = vmatprep.subr.mxu0 0.0
    %463 = vmatpush1.msra.mxu0 0.0
    %464 = vmatprep.subr.mxu0 0.0
    %465 = vmatpush1.msra.mxu0 0.0
    %466 = vmatprep.subr.mxu0 0.0
    %467 = vmatpush1.msra.mxu0 0.0
    %468 = vmatprep.subr.mxu0 0.0
    %469 = vmatpush1.msra.mxu0 0.0
    %470 = vmatprep.subr.mxu0 0.0
    %471 = vmatpush1.msra.mxu0 0.0
    %472 = vmatprep.subr.mxu0 0.0
    %473 = vmatpush1.msra.mxu0 0.0
    %474 = vmatprep.mubr.f32.mxu0 0.0
    %475 = vmatmul.mubr.f32.gmra.mrb[0].mxu0 %v363
    %v476 = vpop.f32.mrb[0].mxu0
    %v477 = vadd.f32 0.0, %v476
    %v478 = vpop.f32.mrb[0].mxu0
    %479 = vmatprep.mubr.f32.mxu0 0.0
    %480 = vmatmul.mubr.f32.gmra.mrb[0].mxu0 %v366
    %v481 = vpop.f32.mrb[0].mxu0
    %v482 = vadd.f32 0.0, %v481
    %v483 = vpop.f32.mrb[0].mxu0
    %484 = vmatprep.mubr.f32.mxu0 0.0
    %485 = vmatmul.mubr.f32.gmra.mrb[0].mxu0 %v369
    %v486 = vpop.f32.mrb[0].mxu0
    %v487 = vadd.f32 0.0, %v486
    %v488 = vpop.f32.mrb[0].mxu0
    %489 = vmatprep.mubr.f32.mxu0 0.0
    %490 = vmatmul.mubr.f32.gmra.mrb[0].mxu0 %v372
    %v491 = vpop.f32.mrb[0].mxu0
    %v492 = vadd.f32 0.0, %v491
    %v493 = vpop.f32.mrb[0].mxu0
    %494 = vmatprep.mubr.f32.mxu0 0.0
    %495 = vmatmul.mubr.f32.gmra.mrb[0].mxu0 %v375
    %v496 = vpop.f32.mrb[0].mxu0
    %v497 = vadd.f32 0.0, %v496
    %v498 = vpop.f32.mrb[0].mxu0
    %499 = vmatprep.mubr.f32.mxu0 0.0
    %500 = vmatmul.mubr.f32.gmra.mrb[0].mxu0 %v378
    %v501 = vpop.f32.mrb[0].mxu0
    %v502 = vadd.f32 0.0, %v501
    %v503 = vpop.f32.mrb[0].mxu0
    %504 = vmatprep.mubr.f32.mxu0 0.0
    %505 = vmatmul.mubr.f32.gmra.mrb[0].mxu0 %v381
    %v506 = vpop.f32.mrb[0].mxu0
    %v507 = vadd.f32 0.0, %v506
    %v508 = vpop.f32.mrb[0].mxu0
    %509 = vmatprep.mubr.f32.mxu0 0.0
    %510 = vmatmul.mubr.f32.gmra.mrb[0].mxu0 %v384
    %v511 = vpop.f32.mrb[0].mxu0
    %v512 = vadd.f32 0.0, %v511
    %v513 = vpop.f32.mrb[0].mxu0
    %514 = vmatprep.mubr.f32.mxu0 0.0
    %515 = vmatmul.mubr.f32.gmra.mrb[0].mxu0 %v387
    %v516 = vpop.f32.mrb[0].mxu0
    %v517 = vadd.f32 0.0, %v516
    %v518 = vpop.f32.mrb[0].mxu0
    %519 = vmatprep.mubr.f32.mxu0 0.0
    %520 = vmatmul.mubr.f32.gmra.mrb[0].mxu0 %v390
    %v521 = vpop.f32.mrb[0].mxu0
    %v522 = vadd.f32 0.0, %v521
    %v523 = vpop.f32.mrb[0].mxu0
    %524 = vmatprep.mubr.f32.mxu0 0.0
    %525 = vmatmul.mubr.f32.gmra.mrb[0].mxu0 %v393
    %v526 = vpop.f32.mrb[0].mxu0
    %v527 = vadd.f32 0.0, %v526
    %v528 = vpop.f32.mrb[0].mxu0
    %529 = vmatprep.mubr.f32.mxu0 0.0
    %530 = vmatmul.mubr.f32.gmra.mrb[0].mxu0 %v396
    %v531 = vpop.f32.mrb[0].mxu0
    %v532 = vadd.f32 0.0, %v531
    %v533 = vpop.f32.mrb[0].mxu0
    %534 = vmatprep.mubr.f32.mxu0 0.0
    %535 = vmatmul.mubr.f32.gmra.mrb[0].mxu0 %v399
    %v536 = vpop.f32.mrb[0].mxu0
    %v537 = vadd.f32 0.0, %v536
    %v538 = vpop.f32.mrb[0].mxu0
    %539 = vmatprep.mubr.f32.mxu0 0.0
    %540 = vmatmul.mubr.f32.gmra.mrb[0].mxu0 %v402
    %v541 = vpop.f32.mrb[0].mxu0
    %v542 = vadd.f32 0.0, %v541
    %v543 = vpop.f32.mrb[0].mxu0
    %544 = vmatprep.mubr.f32.mxu0 0.0
    %545 = vmatmul.mubr.f32.gmra.mrb[0].mxu0 %v405
    %v546 = vpop.f32.mrb[0].mxu0
    %v547 = vadd.f32 0.0, %v546
    %v548 = vpop.f32.mrb[0].mxu0
    %549 = vmatprep.mubr.f32.mxu0 0.0
    %550 = vmatmul.mubr.f32.gmra.mrb[0].mxu0 %v408
    %v551 = vpop.f32.mrb[0].mxu0
    %v552 = vadd.f32 0.0, %v551
    %v553 = vpop.f32.mrb[0].mxu0
    %554 = vdwg.mxu0
    %v555 = vmul.f32 %v248, %v477
    %v556 = vmul.f32 %v253, %v482
    %v557 = vmul.f32 %v258, %v487
    %v558 = vmul.f32 %v263, %v492
    %v559 = vmul.f32 %v268, %v497
    %v560 = vmul.f32 %v273, %v502
    %v561 = vmul.f32 %v278, %v507
    %v562 = vmul.f32 %v283, %v512
    %v563 = vmul.f32 %v288, %v517
    %v564 = vmul.f32 %v293, %v522
    %v565 = vmul.f32 %v298, %v527
    %v566 = vmul.f32 %v303, %v532
    %v567 = vmul.f32 %v308, %v537
    %v568 = vmul.f32 %v313, %v542
    %v569 = vmul.f32 %v318, %v547
    %v570 = vmul.f32 %v323, %v552
    %v571 = vadd.f32 %v555, %v556
    %v572 = vadd.f32 %v571, %v557
    %v573 = vadd.f32 %v572, %v558
    %v574 = vadd.f32 %v573, %v559
    %v575 = vadd.f32 %v574, %v560
    %v576 = vadd.f32 %v575, %v561
    %v577 = vadd.f32 %v576, %v562
    %v578 = vadd.f32 %v577, %v563
    %v579 = vadd.f32 %v578, %v564
    %v580 = vadd.f32 %v579, %v565
    %v581 = vadd.f32 %v580, %v566
    %v582 = vadd.f32 %v581, %v567
    %v583 = vadd.f32 %v582, %v568
    %v584 = vadd.f32 %v583, %v569
    %v585 = vadd.f32 %v584, %v570
    %v586 = vrot.slane %v585, 4
    %v587 = vadd.f32 %v585, %v586
    %v588 = vrot.slane %v587, 2
    %v589 = vadd.f32 %v587, %v588
    %v590 = vrot.slane %v589, 1
    %v591 = vadd.f32 %v589, %v590
    %592 = vst [vmem:[#allocation8] sm:$0x1] %v591
    // Predicated region
    $region30: #{tpu_custom_call.1} parent=1 // pred_check
      _
    $region31: #{tpu_custom_call.1} parent=1 // pred_check_branch
      %594 = sbr.rel (0) target = $region33
    $region32: #{tpu_custom_call.1} parent=1 // pred_region
      %s596 = ssub.s32 16, 16
      %597 = vsyncadd [#allocation4], %s596
      %s599 = sshll.u32 [#allocation8], 4
      %s600 = int_to_ptr.vmem [resolvable:$true] %s599
      %602 = dma.vmem_to_hbm [thread:$0]  %s600, 16, %s4, [#allocation4]
    $region33: #{tpu_custom_call.1} parent=1 // pred_fallthru
      _
    // Predicated region
    $region34: #{tpu_custom_call.1} parent=1 // pred_check
      _
    $region35: #{tpu_custom_call.1} parent=1 // pred_check_branch
      %604 = sbr.rel (0) target = $region37
    $region36: #{tpu_custom_call.1} parent=1 // pred_region
      %605 = dma.done [#allocation4], 16
    $region37: #{tpu_custom_call.1} parent=1 // pred_fallthru
      _
    %606 = vsyncpa [#allocation3], 1
    %607 = vsyncpa [#allocation6], 1
    %608 = vsyncpa [#allocation4], 1

</llo_original>
